<compile_context>
chip_gen: v7x
topology: tpu7x:2x2x1
jax: 0.10.0
libtpu: 0.0.40
codegen_flags: <defaults>
</compile_context>

<pallas_src>
import math
import jax
import jax.numpy as jnp
from jax import lax
from jax.experimental import pallas as pl
from jax.experimental.pallas import tpu as pltpu

INPUT_SIZE = 1
HIDDEN_SIZE = 16
OUTPUT_SIZE = 1
NUM_LAYERS = 3


def rnn_fc_kernel(x_ref, h0_ref, slab_ref, out_ref, hn_ref):
    """Wavefront multi-layer tanh-RNN + fused Linear(H,1), all in VMEM/vregs.

    x_ref   : (B, T, I)   batch-first input
    h0_ref  : (L, B, H)   initial hidden state
    slab_ref: (L*H+3+I, L*H) packed weights:
                rows [0, LH)       : W_pack  (W_hh blocks on diag, W_ih blocks above)
                row  LH            : b_cat   (b_ih + b_hh per layer, concatenated)
                row  LH+1          : w_fc row, zero except lanes [(L-1)H, LH)
                rows [LH+2, LH+2+I): layer-0 W_ih^T, zero outside lanes [0, H)
                row  LH+2+I        : fc bias at lane 0
    out_ref : (B, T)      fc(last-layer outputs), lane-dense
    hn_ref  : (B, L*H)    final hidden state, one packed row
    """
    B, T, I = x_ref.shape
    L, _, H = h0_ref.shape
    LH = L * H

    # ---- unpack the single weight slab (static slices; loaded once) ----
    w_pack   = slab_ref[0:LH, :]                      # (LH, LH)
    b_cat    = slab_ref[LH:LH + 1, :]                 # (1, LH)
    w_fc_row = slab_ref[LH + 1:LH + 2, :]             # (1, LH)
    w_ih0    = slab_ref[LH + 2:LH + 2 + I, :]         # (I, LH)
    b_fc     = slab_ref[LH + 2 + I:LH + 3 + I, 0:1]   # (1, 1)

    # Layer-0 input projection (+ per-layer biases folded in) for ALL timesteps
    # at once.  I == 1 makes it a pure VPU broadcast multiply; w_ih0 is already
    # zero-padded to LH lanes so no in-kernel padding is needed.
    if I == 1:
        xpb = x_ref[...] * w_ih0[None, :, :] + b_cat[None, :, :]      # (B, T, LH)
    else:
        xpb = lax.dot_general(x_ref[...], w_ih0, (((2,), (0,)), ((), ())),
                              preferred_element_type=jnp.float32) + b_cat[None, :, :]

    # Packed initial state [h0 | h1 | h2] kept purely in vregs.
    state = jnp.concatenate([h0_ref[l] for l in range(L)], axis=-1)    # (B, LH)
    lane = lax.broadcasted_iota(jnp.int32, (B, LH), 1)

    outs = []
    # Wavefront: step s updates cell (l, t = s - l) for every active layer.
    for s in range(T + L - 1):
        hh = jnp.dot(state, w_pack, preferred_element_type=jnp.float32)
        if s < T:                      # layer 0 consumes x_t (bias folded in xpb)
            hh = hh + xpb[:, s, :]
        else:                          # cool-down: layer-0 lanes are masked below
            hh = hh + b_cat
        new_state = jnp.tanh(hh)       # ONE tanh over the whole packed row

        # Static warm-up / cool-down lane mask: active layers are s-T+1 <= l <= s.
        lo = max(0, s - T + 1) * H
        hi = min(L, s + 1) * H
        if lo > 0 or hi < LH:
            keep = (lane >= lo) & (lane < hi)
            new_state = jnp.where(keep, new_state, state)
        state = new_state

        # Last layer produced time t = s - (L-1): fused fc (O == 1) on VPU+XLU;
        # w_fc_row is zero outside the last layer's lanes.
        if s >= L - 1:
            outs.append(jnp.sum(state * w_fc_row, axis=-1, keepdims=True))   # (B,1)

    out_ref[...] = jnp.concatenate(outs, axis=-1) + b_fc     # (B, T), lane-dense
    hn_ref[...] = state                                      # (B, LH), one store


def pack_params(p, L=NUM_LAYERS, H=HIDDEN_SIZE, I=INPUT_SIZE, O=OUTPUT_SIZE):
    """One-time packing of all weights/biases into a single (LH+3+I, LH) slab."""
    assert O == 1, "fused VPU fc assumes output_size == 1 (as in the spec)"
    LH = L * H
    slab = jnp.zeros((LH + 3 + I, LH), jnp.float32)
    # Wavefront weight matrix: W_hh^T blocks on the diagonal, W_ih^T blocks just
    # above it (layer l reads layer l-1's state segment).
    slab = slab.at[0:H, 0:H].set(p["w_hh0"])
    for l in range(1, L):
        slab = slab.at[(l - 1) * H:l * H, l * H:(l + 1) * H].set(p["w_ih"][l - 1])
        slab = slab.at[l * H:(l + 1) * H, l * H:(l + 1) * H].set(p["w_hh"][l - 1])
    slab = slab.at[LH, :].set(p["b"].reshape(LH))                       # b_ih + b_hh
    slab = slab.at[LH + 1, (L - 1) * H:LH].set(p["w_fc"][:, 0])         # fc weight row
    slab = slab.at[LH + 2:LH + 2 + I, 0:H].set(p["w_ih0"])              # layer-0 W_ih^T
    slab = slab.at[LH + 2 + I, 0].set(p["b_fc"][0, 0])                  # fc bias
    return slab


def net_forward(x_btI, hidden, slab):
    """x_btI: (B, T, I) batch-first; hidden: (L, B, H); slab: packed weights.
    Returns (out, hidden) with out shaped (1, B*T, 1) exactly like PyTorch."""
    B, T, I = x_btI.shape
    L, _, H = hidden.shape

    out_bt, hn_row = pl.pallas_call(
        rnn_fc_kernel,
        out_shape=(jax.ShapeDtypeStruct((B, T), jnp.float32),
                   jax.ShapeDtypeStruct((B, L * H), jnp.float32)),
        in_specs=[pl.BlockSpec(memory_space=pltpu.MemorySpace.VMEM),
                  pl.BlockSpec(memory_space=pltpu.MemorySpace.VMEM),
                  pl.BlockSpec(memory_space=pltpu.MemorySpace.VMEM)],
        out_specs=(pl.BlockSpec(memory_space=pltpu.MemorySpace.VMEM),
                   pl.BlockSpec(memory_space=pltpu.MemorySpace.VMEM)),
    )(x_btI, hidden, slab)

    # PyTorch: out.view(-1, H) on a batch_first tensor orders rows (b, t); the
    # kernel output is already (b, t) ordered, so plain reshapes suffice.
    out = out_bt.reshape(B * T, 1)[None]                     # (1, B*T, 1)
    hn = hn_row.reshape(B, L, H).swapaxes(0, 1)              # (L, B, H)
    return out, hn


def init_params(key, I=INPUT_SIZE, H=HIDDEN_SIZE, O=OUTPUT_SIZE, L=NUM_LAYERS):
    """Deterministic init mimicking PyTorch's U(-1/sqrt(H), 1/sqrt(H))."""
    k = 1.0 / math.sqrt(H)
    keys = jax.random.split(key, 8)
    u = lambda kk, shape: jax.random.uniform(kk, shape, jnp.float32, -k, k)
    return {
        "w_ih0": u(keys[0], (I, H)),             # layer-0 W_ih^T
        "w_hh0": u(keys[1], (H, H)),             # layer-0 W_hh^T
        "w_ih":  u(keys[2], (L - 1, H, H)),      # layers 1.. W_ih^T
        "w_hh":  u(keys[3], (L - 1, H, H)),      # layers 1.. W_hh^T
        "b":     u(keys[4], (L, H)) + u(keys[5], (L, H)),   # b_ih + b_hh
        "w_fc":  u(keys[6], (H, O)),             # fc weight^T
        "b_fc":  u(keys[7], (1, O)),             # fc bias
    }


def reference_forward(x_btI, hidden, params):
    """Pure-JAX reference with identical semantics (for correctness check)."""
    B, T, I = x_btI.shape
    L, _, H = hidden.shape
    y = x_btI
    hn = []
    for l in range(L):
        wih = params["w_ih0"] if l == 0 else params["w_ih"][l - 1]
        whh = params["w_hh0"] if l == 0 else params["w_hh"][l - 1]
        bl = params["b"][l]
        h = hidden[l]
        outs = []
        for t in range(T):
            h = jnp.tanh(y[:, t, :] @ wih + h @ whh + bl[None, :])
            outs.append(h)
        y = jnp.stack(outs, axis=1)              # (B, T, H)
        hn.append(h)
    hn = jnp.stack(hn, axis=0)                   # (L, B, H)
    out = y.reshape(B * T, H) @ params["w_fc"] + params["b_fc"]
    return out[None], hn


if __name__ == "__main__":
    key = jax.random.PRNGKey(0)
    pkey, xkey = jax.random.split(key)
    params = init_params(pkey)
    slab = pack_params(params)

    B, T = 1, 8                                   # batch_size=1 as in init_hidden(1)
    x = jax.random.normal(xkey, (B, T, INPUT_SIZE), jnp.float32)
    hidden = jnp.zeros((NUM_LAYERS, B, HIDDEN_SIZE), jnp.float32)

    fwd = jax.jit(net_forward)
    out, hn = fwd(x, hidden, slab)
    out = jax.block_until_ready(out)
    hn = jax.block_until_ready(hn)

    out_ref, hn_ref = reference_forward(x, hidden, params)
    assert out.shape == (1, B * T, OUTPUT_SIZE)
    assert hn.shape == (NUM_LAYERS, B, HIDDEN_SIZE)
    assert jnp.allclose(out, out_ref, atol=1e-5), "output mismatch"
    assert jnp.allclose(hn, hn_ref, atol=1e-5), "hidden mismatch"
    print("KERNEL_OK")
</pallas_src>

<mosaic_0001>
module attributes {stable_mosaic.version = 11 : i64} {
  func.func @rnn_fc_kernel(%arg0: memref<1x8x1xf32, #tpu.memory_space<vmem>>, %arg1: memref<3x1x16xf32, #tpu.memory_space<vmem>>, %arg2: memref<52x48xf32, #tpu.memory_space<vmem>>, %arg3: memref<1x8xf32, #tpu.memory_space<vmem>>, %arg4: memref<1x48xf32, #tpu.memory_space<vmem>>) attributes {dimension_semantics = [], scalar_prefetch = 0 : i64, scratch_operands = 0 : i64, tpu.core_type = #tpu.core_type<tc>} {
    %c0 = arith.constant 0 : index
    %c0_0 = arith.constant 0 : index
    %0 = vector.load %arg2[%c0, %c0_0] : memref<52x48xf32, #tpu.memory_space<vmem>>, vector<48x48xf32>
    %c48 = arith.constant 48 : index
    %c0_1 = arith.constant 0 : index
    %1 = vector.load %arg2[%c48, %c0_1] : memref<52x48xf32, #tpu.memory_space<vmem>>, vector<1x48xf32>
    %c49 = arith.constant 49 : index
    %c0_2 = arith.constant 0 : index
    %2 = vector.load %arg2[%c49, %c0_2] : memref<52x48xf32, #tpu.memory_space<vmem>>, vector<1x48xf32>
    %c50 = arith.constant 50 : index
    %c0_3 = arith.constant 0 : index
    %3 = vector.load %arg2[%c50, %c0_3] : memref<52x48xf32, #tpu.memory_space<vmem>>, vector<1x48xf32>
    %c51 = arith.constant 51 : index
    %c0_4 = arith.constant 0 : index
    %4 = vector.load %arg2[%c51, %c0_4] : memref<52x48xf32, #tpu.memory_space<vmem>>, vector<1x1xf32>
    %c0_5 = arith.constant 0 : index
    %c0_6 = arith.constant 0 : index
    %c0_7 = arith.constant 0 : index
    %5 = vector.load %arg0[%c0_5, %c0_6, %c0_7] : memref<1x8x1xf32, #tpu.memory_space<vmem>>, vector<1x8x1xf32>
    %6 = vector.shape_cast %3 : vector<1x48xf32> to vector<1x1x48xf32>
    %7 = vector.broadcast %5 : vector<1x8x1xf32> to vector<1x8x48xf32>
    %8 = vector.broadcast %6 : vector<1x1x48xf32> to vector<1x8x48xf32>
    %9 = arith.mulf %7, %8 : vector<1x8x48xf32>
    %10 = vector.shape_cast %1 : vector<1x48xf32> to vector<1x1x48xf32>
    %11 = vector.broadcast %10 : vector<1x1x48xf32> to vector<1x8x48xf32>
    %12 = arith.addf %9, %11 : vector<1x8x48xf32>
    %c0_8 = arith.constant 0 : index
    %c0_9 = arith.constant 0 : index
    %c0_10 = arith.constant 0 : index
    %13 = vector.load %arg1[%c0_8, %c0_9, %c0_10] : memref<3x1x16xf32, #tpu.memory_space<vmem>>, vector<1x1x16xf32>
    %14 = vector.shape_cast %13 : vector<1x1x16xf32> to vector<1x16xf32>
    %c1 = arith.constant 1 : index
    %c0_11 = arith.constant 0 : index
    %c0_12 = arith.constant 0 : index
    %15 = vector.load %arg1[%c1, %c0_11, %c0_12] : memref<3x1x16xf32, #tpu.memory_space<vmem>>, vector<1x1x16xf32>
    %16 = vector.shape_cast %15 : vector<1x1x16xf32> to vector<1x16xf32>
    %c2 = arith.constant 2 : index
    %c0_13 = arith.constant 0 : index
    %c0_14 = arith.constant 0 : index
    %17 = vector.load %arg1[%c2, %c0_13, %c0_14] : memref<3x1x16xf32, #tpu.memory_space<vmem>>, vector<1x1x16xf32>
    %18 = vector.shape_cast %17 : vector<1x1x16xf32> to vector<1x16xf32>
    %19 = tpu.concatenate %14, %16, %18 in 1 : vector<1x16xf32>, vector<1x16xf32>, vector<1x16xf32> -> vector<1x48xf32>
    %20 = tpu.iota {dimensions = array<i32: 1>} : vector<1x48xi32>
    %cst = arith.constant dense<0.000000e+00> : vector<1x48xf32>
    %21 = tpu.matmul %19, %0, %cst {dimension_numbers = #tpu.dot_dimension_numbers<[1], [0], [0], [1], [0, 0, 1, 1], [], []>} : vector<1x48xf32>, vector<48x48xf32>, vector<1x48xf32> -> vector<1x48xf32>
    %22 = vector.extract_strided_slice %12 {offsets = [0, 0, 0], sizes = [1, 1, 48], strides = [1, 1, 1]} : vector<1x8x48xf32> to vector<1x1x48xf32>
    %23 = vector.shape_cast %22 : vector<1x1x48xf32> to vector<1x48xf32>
    %24 = arith.addf %21, %23 : vector<1x48xf32>
    %25 = math.tanh %24 : vector<1x48xf32>
    %c0_i32 = arith.constant 0 : i32
    %26 = vector.broadcast %c0_i32 : i32 to vector<1x48xi32>
    %27 = arith.cmpi sge, %20, %26 : vector<1x48xi32>
    %c16_i32 = arith.constant 16 : i32
    %28 = vector.broadcast %c16_i32 : i32 to vector<1x48xi32>
    %29 = arith.cmpi slt, %20, %28 : vector<1x48xi32>
    %30 = arith.andi %27, %29 : vector<1x48xi1>
    %31 = arith.select %30, %25, %19 : vector<1x48xi1>, vector<1x48xf32>
    %cst_15 = arith.constant dense<0.000000e+00> : vector<1x48xf32>
    %32 = tpu.matmul %31, %0, %cst_15 {dimension_numbers = #tpu.dot_dimension_numbers<[1], [0], [0], [1], [0, 0, 1, 1], [], []>} : vector<1x48xf32>, vector<48x48xf32>, vector<1x48xf32> -> vector<1x48xf32>
    %33 = vector.extract_strided_slice %12 {offsets = [0, 1, 0], sizes = [1, 1, 48], strides = [1, 1, 1]} : vector<1x8x48xf32> to vector<1x1x48xf32>
    %34 = vector.shape_cast %33 : vector<1x1x48xf32> to vector<1x48xf32>
    %35 = arith.addf %32, %34 : vector<1x48xf32>
    %36 = math.tanh %35 : vector<1x48xf32>
    %c0_i32_16 = arith.constant 0 : i32
    %37 = vector.broadcast %c0_i32_16 : i32 to vector<1x48xi32>
    %38 = arith.cmpi sge, %20, %37 : vector<1x48xi32>
    %c32_i32 = arith.constant 32 : i32
    %39 = vector.broadcast %c32_i32 : i32 to vector<1x48xi32>
    %40 = arith.cmpi slt, %20, %39 : vector<1x48xi32>
    %41 = arith.andi %38, %40 : vector<1x48xi1>
    %42 = arith.select %41, %36, %31 : vector<1x48xi1>, vector<1x48xf32>
    %cst_17 = arith.constant dense<0.000000e+00> : vector<1x48xf32>
    %43 = tpu.matmul %42, %0, %cst_17 {dimension_numbers = #tpu.dot_dimension_numbers<[1], [0], [0], [1], [0, 0, 1, 1], [], []>} : vector<1x48xf32>, vector<48x48xf32>, vector<1x48xf32> -> vector<1x48xf32>
    %44 = vector.extract_strided_slice %12 {offsets = [0, 2, 0], sizes = [1, 1, 48], strides = [1, 1, 1]} : vector<1x8x48xf32> to vector<1x1x48xf32>
    %45 = vector.shape_cast %44 : vector<1x1x48xf32> to vector<1x48xf32>
    %46 = arith.addf %43, %45 : vector<1x48xf32>
    %47 = math.tanh %46 : vector<1x48xf32>
    %48 = arith.mulf %47, %2 : vector<1x48xf32>
    %cst_18 = arith.constant dense<0.000000e+00> : vector<1xf32>
    %49 = vector.multi_reduction <add>, %48, %cst_18 [1] : vector<1x48xf32> to vector<1xf32>
    %50 = vector.shape_cast %49 : vector<1xf32> to vector<1x1xf32>
    %cst_19 = arith.constant dense<0.000000e+00> : vector<1x48xf32>
    %51 = tpu.matmul %47, %0, %cst_19 {dimension_numbers = #tpu.dot_dimension_numbers<[1], [0], [0], [1], [0, 0, 1, 1], [], []>} : vector<1x48xf32>, vector<48x48xf32>, vector<1x48xf32> -> vector<1x48xf32>
    %52 = vector.extract_strided_slice %12 {offsets = [0, 3, 0], sizes = [1, 1, 48], strides = [1, 1, 1]} : vector<1x8x48xf32> to vector<1x1x48xf32>
    %53 = vector.shape_cast %52 : vector<1x1x48xf32> to vector<1x48xf32>
    %54 = arith.addf %51, %53 : vector<1x48xf32>
    %55 = math.tanh %54 : vector<1x48xf32>
    %56 = arith.mulf %55, %2 : vector<1x48xf32>
    %cst_20 = arith.constant dense<0.000000e+00> : vector<1xf32>
    %57 = vector.multi_reduction <add>, %56, %cst_20 [1] : vector<1x48xf32> to vector<1xf32>
    %58 = vector.shape_cast %57 : vector<1xf32> to vector<1x1xf32>
    %cst_21 = arith.constant dense<0.000000e+00> : vector<1x48xf32>
    %59 = tpu.matmul %55, %0, %cst_21 {dimension_numbers = #tpu.dot_dimension_numbers<[1], [0], [0], [1], [0, 0, 1, 1], [], []>} : vector<1x48xf32>, vector<48x48xf32>, vector<1x48xf32> -> vector<1x48xf32>
    %60 = vector.extract_strided_slice %12 {offsets = [0, 4, 0], sizes = [1, 1, 48], strides = [1, 1, 1]} : vector<1x8x48xf32> to vector<1x1x48xf32>
    %61 = vector.shape_cast %60 : vector<1x1x48xf32> to vector<1x48xf32>
    %62 = arith.addf %59, %61 : vector<1x48xf32>
    %63 = math.tanh %62 : vector<1x48xf32>
    %64 = arith.mulf %63, %2 : vector<1x48xf32>
    %cst_22 = arith.constant dense<0.000000e+00> : vector<1xf32>
    %65 = vector.multi_reduction <add>, %64, %cst_22 [1] : vector<1x48xf32> to vector<1xf32>
    %66 = vector.shape_cast %65 : vector<1xf32> to vector<1x1xf32>
    %cst_23 = arith.constant dense<0.000000e+00> : vector<1x48xf32>
    %67 = tpu.matmul %63, %0, %cst_23 {dimension_numbers = #tpu.dot_dimension_numbers<[1], [0], [0], [1], [0, 0, 1, 1], [], []>} : vector<1x48xf32>, vector<48x48xf32>, vector<1x48xf32> -> vector<1x48xf32>
    %68 = vector.extract_strided_slice %12 {offsets = [0, 5, 0], sizes = [1, 1, 48], strides = [1, 1, 1]} : vector<1x8x48xf32> to vector<1x1x48xf32>
    %69 = vector.shape_cast %68 : vector<1x1x48xf32> to vector<1x48xf32>
    %70 = arith.addf %67, %69 : vector<1x48xf32>
    %71 = math.tanh %70 : vector<1x48xf32>
    %72 = arith.mulf %71, %2 : vector<1x48xf32>
    %cst_24 = arith.constant dense<0.000000e+00> : vector<1xf32>
    %73 = vector.multi_reduction <add>, %72, %cst_24 [1] : vector<1x48xf32> to vector<1xf32>
    %74 = vector.shape_cast %73 : vector<1xf32> to vector<1x1xf32>
    %cst_25 = arith.constant dense<0.000000e+00> : vector<1x48xf32>
    %75 = tpu.matmul %71, %0, %cst_25 {dimension_numbers = #tpu.dot_dimension_numbers<[1], [0], [0], [1], [0, 0, 1, 1], [], []>} : vector<1x48xf32>, vector<48x48xf32>, vector<1x48xf32> -> vector<1x48xf32>
    %76 = vector.extract_strided_slice %12 {offsets = [0, 6, 0], sizes = [1, 1, 48], strides = [1, 1, 1]} : vector<1x8x48xf32> to vector<1x1x48xf32>
    %77 = vector.shape_cast %76 : vector<1x1x48xf32> to vector<1x48xf32>
    %78 = arith.addf %75, %77 : vector<1x48xf32>
    %79 = math.tanh %78 : vector<1x48xf32>
    %80 = arith.mulf %79, %2 : vector<1x48xf32>
    %cst_26 = arith.constant dense<0.000000e+00> : vector<1xf32>
    %81 = vector.multi_reduction <add>, %80, %cst_26 [1] : vector<1x48xf32> to vector<1xf32>
    %82 = vector.shape_cast %81 : vector<1xf32> to vector<1x1xf32>
    %cst_27 = arith.constant dense<0.000000e+00> : vector<1x48xf32>
    %83 = tpu.matmul %79, %0, %cst_27 {dimension_numbers = #tpu.dot_dimension_numbers<[1], [0], [0], [1], [0, 0, 1, 1], [], []>} : vector<1x48xf32>, vector<48x48xf32>, vector<1x48xf32> -> vector<1x48xf32>
    %84 = vector.extract_strided_slice %12 {offsets = [0, 7, 0], sizes = [1, 1, 48], strides = [1, 1, 1]} : vector<1x8x48xf32> to vector<1x1x48xf32>
    %85 = vector.shape_cast %84 : vector<1x1x48xf32> to vector<1x48xf32>
    %86 = arith.addf %83, %85 : vector<1x48xf32>
    %87 = math.tanh %86 : vector<1x48xf32>
    %88 = arith.mulf %87, %2 : vector<1x48xf32>
    %cst_28 = arith.constant dense<0.000000e+00> : vector<1xf32>
    %89 = vector.multi_reduction <add>, %88, %cst_28 [1] : vector<1x48xf32> to vector<1xf32>
    %90 = vector.shape_cast %89 : vector<1xf32> to vector<1x1xf32>
    %cst_29 = arith.constant dense<0.000000e+00> : vector<1x48xf32>
    %91 = tpu.matmul %87, %0, %cst_29 {dimension_numbers = #tpu.dot_dimension_numbers<[1], [0], [0], [1], [0, 0, 1, 1], [], []>} : vector<1x48xf32>, vector<48x48xf32>, vector<1x48xf32> -> vector<1x48xf32>
    %92 = arith.addf %91, %1 : vector<1x48xf32>
    %93 = math.tanh %92 : vector<1x48xf32>
    %c16_i32_30 = arith.constant 16 : i32
    %94 = vector.broadcast %c16_i32_30 : i32 to vector<1x48xi32>
    %95 = arith.cmpi sge, %20, %94 : vector<1x48xi32>
    %c48_i32 = arith.constant 48 : i32
    %96 = vector.broadcast %c48_i32 : i32 to vector<1x48xi32>
    %97 = arith.cmpi slt, %20, %96 : vector<1x48xi32>
    %98 = arith.andi %95, %97 : vector<1x48xi1>
    %99 = arith.select %98, %93, %87 : vector<1x48xi1>, vector<1x48xf32>
    %100 = arith.mulf %99, %2 : vector<1x48xf32>
    %cst_31 = arith.constant dense<0.000000e+00> : vector<1xf32>
    %101 = vector.multi_reduction <add>, %100, %cst_31 [1] : vector<1x48xf32> to vector<1xf32>
    %102 = vector.shape_cast %101 : vector<1xf32> to vector<1x1xf32>
    %cst_32 = arith.constant dense<0.000000e+00> : vector<1x48xf32>
    %103 = tpu.matmul %99, %0, %cst_32 {dimension_numbers = #tpu.dot_dimension_numbers<[1], [0], [0], [1], [0, 0, 1, 1], [], []>} : vector<1x48xf32>, vector<48x48xf32>, vector<1x48xf32> -> vector<1x48xf32>
    %104 = arith.addf %103, %1 : vector<1x48xf32>
    %105 = math.tanh %104 : vector<1x48xf32>
    %c32_i32_33 = arith.constant 32 : i32
    %106 = vector.broadcast %c32_i32_33 : i32 to vector<1x48xi32>
    %107 = arith.cmpi sge, %20, %106 : vector<1x48xi32>
    %c48_i32_34 = arith.constant 48 : i32
    %108 = vector.broadcast %c48_i32_34 : i32 to vector<1x48xi32>
    %109 = arith.cmpi slt, %20, %108 : vector<1x48xi32>
    %110 = arith.andi %107, %109 : vector<1x48xi1>
    %111 = arith.select %110, %105, %99 : vector<1x48xi1>, vector<1x48xf32>
    %112 = arith.mulf %111, %2 : vector<1x48xf32>
    %cst_35 = arith.constant dense<0.000000e+00> : vector<1xf32>
    %113 = vector.multi_reduction <add>, %112, %cst_35 [1] : vector<1x48xf32> to vector<1xf32>
    %114 = vector.shape_cast %113 : vector<1xf32> to vector<1x1xf32>
    %115 = tpu.concatenate %50, %58, %66, %74, %82, %90, %102, %114 in 1 : vector<1x1xf32>, vector<1x1xf32>, vector<1x1xf32>, vector<1x1xf32>, vector<1x1xf32>, vector<1x1xf32>, vector<1x1xf32>, vector<1x1xf32> -> vector<1x8xf32>
    %116 = vector.broadcast %4 : vector<1x1xf32> to vector<1x8xf32>
    %117 = arith.addf %115, %116 : vector<1x8xf32>
    %c0_36 = arith.constant 0 : index
    %c0_37 = arith.constant 0 : index
    %118 = vector.load %arg3[%c0_36, %c0_37] : memref<1x8xf32, #tpu.memory_space<vmem>>, vector<1x8xf32>
    tpu.vector_store %arg3[%c0_36, %c0_37], %117 {strides = array<i32>} : memref<1x8xf32, #tpu.memory_space<vmem>>, vector<1x8xf32>,
    %c0_38 = arith.constant 0 : index
    %c0_39 = arith.constant 0 : index
    %119 = vector.load %arg4[%c0_38, %c0_39] : memref<1x48xf32, #tpu.memory_space<vmem>>, vector<1x48xf32>
    tpu.vector_store %arg4[%c0_38, %c0_39], %111 {strides = array<i32>} : memref<1x48xf32, #tpu.memory_space<vmem>>, vector<1x48xf32>,
    return
  }
}

</mosaic_0001>

<llo_original>
// kernel: net_forward.1
$region0: #{net_forward.1}
  #allocation0 [shape = 'u32[]', space=smem, size = 0x4, offset = 0x4, fixed_abs, tag = 'smem constant byte address 0x4 - core index']
  #allocation1 [shape = 'u32[144,128]{1,0:T(1,128)}', space=vmem, size = 0x12000, scoped, tag = 'internal scratch']
  %s0 = inlined_call_operand.vmem [shape: f32[1,8,1], index: 0, kind: input, shape index: {}]
  %s1 = inlined_call_operand.vmem [shape: f32[3,1,16], index: 1, kind: input, shape index: {}]
  %s2 = inlined_call_operand.vmem [shape: f32[52,48], index: 2, kind: input, shape index: {}]
  %s3 = inlined_call_operand.hbm [shape: f32[1,8], index: 3, kind: output, shape index: {0}]
  %s4 = inlined_call_operand.vmem [shape: f32[1,48], index: 4, kind: output, shape index: {1}]
  %5 = xla_tuple %s3, %s4
  %s6 = sld [smem:[#allocation0]]
  $region30: #{net_forward.1} parent=0
    _
  %s8 = ssub.s32 1, %s6
  %s9 = scalar_select 0, %s8, %s6
  $region1: #{net_forward.1} parent=0
    #allocation2 [shape = 'u8[512]{0}', space=vmem, size = 0x400, scoped, tag = 'output window, operand 0, single buffered']
    #allocation3 [shape = 's32[1]{0}', space=sflag, size = 0x4, scoped, tag = 'scoped memory for net_forward.1']
    %10 = vsyncpa [#allocation3], 0
    // Predicated region
    $region2: #{net_forward.1} parent=1 // pred_check
      _
    $region3: #{net_forward.1} parent=1 // pred_check_branch
      %12 = sbr.rel (0) target = $region5
    $region4: #{net_forward.1} parent=1 // pred_region
      _
    $region5: #{net_forward.1} parent=1 // pred_fallthru
      _
    // Predicated region
    $region6: #{net_forward.1} parent=1 // pred_check
      _
    $region7: #{net_forward.1} parent=1 // pred_check_branch
      %14 = sbr.rel (0) target = $region9
    $region8: #{net_forward.1} parent=1 // pred_region
      _
    $region9: #{net_forward.1} parent=1 // pred_fallthru
      _
    // Predicated region
    $region10: #{net_forward.1} parent=1 // pred_check
      _
    $region11: #{net_forward.1} parent=1 // pred_check_branch
      %16 = sbr.rel (0) target = $region13
    $region12: #{net_forward.1} parent=1 // pred_region
      _
    $region13: #{net_forward.1} parent=1 // pred_fallthru
      _
    %v17 = vld [vmem:[%s2] sm:$0xff]
    %v18 = vld [vmem:[%s2 + $0x8] sm:$0xff]
    %v19 = vld [vmem:[%s2 + $0x10] sm:$0xff]
    %v20 = vld [vmem:[%s2 + $0x18] sm:$0xff]
    %v21 = vld [vmem:[%s2 + $0x20] sm:$0xff]
    %v22 = vld [vmem:[%s2 + $0x28] sm:$0xff]
    %v23 = vld [vmem:[%s2 + $0x30] sm:$0x1]
    %v24 = vld [vmem:[%s2 + $0x31] sm:$0x1]
    %v25 = vld [vmem:[%s2 + $0x32] sm:$0x1]
    %v26 = vld [vmem:[%s2 + $0x33] sm:$0x1]
    %v27 = vld [vmem:[%s0] sm:$0xff]
    %29 = vset.pattern.permute.xlu0 0
    %30 = vperm.xlu0 %29, %v27
    %v31 = vpop.permute.xlu0 %30
    %v33 = vlaneseq
    %v34 = vshrl.u32 %v33, 7
    %v35 = vsub.s32 0, %v34
    %v36 = vrot.slane %v25, %v35
    %v37 = vmul.f32 %v31, %v36
    %v38 = vlaneseq
    %v39 = vshrl.u32 %v38, 7
    %v40 = vsub.s32 0, %v39
    %v41 = vrot.slane %v23, %v40
    %v42 = vadd.f32 %v37, %v41
    %v43 = vld [vmem:[%s1] sm:$0x1]
    %s44 = scalar_lea.vmem %s1, 1
    %v45 = vld [vmem:[%s44] sm:$0x1]
    %s46 = scalar_lea.vmem %s1, 2
    %v47 = vld [vmem:[%s46] sm:$0x1]
    %v49 = vlaneseq
    %v50 = vshrl.u32 %v49, 7
    %v51 = vsub.s32 0, %v50
    %v52 = vrot.slane %v45, %v51
    %53 = vrot.lane.b32.xlu0 %v52, 16
    %v54 = vpop.permute.xlu0 %53
    %v57 = vlaneseq
    %v58 = vshrl.u32 %v57, 7
    %v59 = vsub.s32 0, %v58
    %v60 = vrot.slane %v47, %v59
    %61 = vrot.lane.b32.xlu0 %v60, 32
    %v62 = vpop.permute.xlu0 %61
    %vm64 = vcmask 130048
    %v65 = vsel %vm64, %v43, %v54
    %vm66 = vcmask 261120
    %v67 = vsel %vm66, %v65, %v62
    %v68 = vlaneseq
    %v69 = vand.u32 %v68, 127
    %vm70 = vcmask 392192
    %v72 = vsel %vm70, %v67, 0
    %74 = vmatprep.subr.mxu0 0.0
    %75 = vmatpush1.msra.mxu0 %v17
    %76 = vmatprep.subr.mxu0 0.0
    %77 = vmatpush1.msra.mxu0 %v18
    %78 = vmatprep.subr.mxu0 0.0
    %79 = vmatpush1.msra.mxu0 %v19
    %80 = vmatprep.subr.mxu0 0.0
    %81 = vmatpush1.msra.mxu0 %v20
    %82 = vmatprep.subr.mxu0 0.0
    %83 = vmatpush1.msra.mxu0 %v21
    %84 = vmatprep.subr.mxu0 0.0
    %85 = vmatpush1.msra.mxu0 %v22
    %86 = vmatprep.subr.mxu0 0.0
    %87 = vmatpush1.msra.mxu0 0.0
    %88 = vmatprep.subr.mxu0 0.0
    %89 = vmatpush1.msra.mxu0 0.0
    %90 = vmatprep.subr.mxu0 0.0
    %91 = vmatpush1.msra.mxu0 0.0
    %92 = vmatprep.subr.mxu0 0.0
    %93 = vmatpush1.msra.mxu0 0.0
    %94 = vmatprep.subr.mxu0 0.0
    %95 = vmatpush1.msra.mxu0 0.0
    %96 = vmatprep.subr.mxu0 0.0
    %97 = vmatpush1.msra.mxu0 0.0
    %98 = vmatprep.subr.mxu0 0.0
    %99 = vmatpush1.msra.mxu0 0.0
    %100 = vmatprep.subr.mxu0 0.0
    %101 = vmatpush1.msra.mxu0 0.0
    %102 = vmatprep.subr.mxu0 0.0
    %103 = vmatpush1.msra.mxu0 0.0
    %104 = vmatprep.subr.mxu0 0.0
    %105 = vmatpush1.msra.mxu0 0.0
    %106 = vmatprep.subr.mxu0 0.0
    %107 = vmatpush1.msra.mxu0 0.0
    %108 = vmatprep.subr.mxu0 0.0
    %109 = vmatpush1.msra.mxu0 0.0
    %110 = vmatprep.subr.mxu0 0.0
    %111 = vmatpush1.msra.mxu0 0.0
    %112 = vmatprep.subr.mxu0 0.0
    %113 = vmatpush1.msra.mxu0 0.0
    %114 = vmatprep.subr.mxu0 0.0
    %115 = vmatpush1.msra.mxu0 0.0
    %116 = vmatprep.subr.mxu0 0.0
    %117 = vmatpush1.msra.mxu0 0.0
    %118 = vmatprep.subr.mxu0 0.0
    %119 = vmatpush1.msra.mxu0 0.0
    %120 = vmatprep.subr.mxu0 0.0
    %121 = vmatpush1.msra.mxu0 0.0
    %122 = vmatprep.subr.mxu0 0.0
    %123 = vmatpush1.msra.mxu0 0.0
    %124 = vmatprep.subr.mxu0 0.0
    %125 = vmatpush1.msra.mxu0 0.0
    %126 = vmatprep.subr.mxu0 0.0
    %127 = vmatpush1.msra.mxu0 0.0
    %128 = vmatprep.subr.mxu0 0.0
    %129 = vmatpush1.msra.mxu0 0.0
    %130 = vmatprep.subr.mxu0 0.0
    %131 = vmatpush1.msra.mxu0 0.0
    %132 = vmatprep.subr.mxu0 0.0
    %133 = vmatpush1.msra.mxu0 0.0
    %134 = vmatprep.subr.mxu0 0.0
    %135 = vmatpush1.msra.mxu0 0.0
    %136 = vmatprep.subr.mxu0 0.0
    %137 = vmatpush1.msra.mxu0 0.0
    %138 = vmatprep.mubr.f32.mxu0 0.0
    %139 = vmatmul.mubr.f32.gmra.mrb[0].mxu0 %v72
    %v140 = vpop.f32.mrb[0].mxu0
    %v141 = vadd.f32 %v42, %v140
    %v142 = vpop.f32.mrb[0].mxu0
    %143 = vdwg.mxu0
    %v144 = vtanh.pop %v141
    %vm145 = vcmp.ge.s32.totalorder %v69, 0
    %vm146 = vcmp.lt.s32.totalorder %v69, 16
    %vm147 = vmand %vm145, %vm146
    %v148 = vsel %vm147, %v144, %v67
    %v150 = vrot.slane %v42, 1
    %v153 = vsel %vm70, %v148, 0
    %155 = vmatprep.subr.mxu0 0.0
    %156 = vmatpush1.msra.mxu0 %v17
    %157 = vmatprep.subr.mxu0 0.0
    %158 = vmatpush1.msra.mxu0 %v18
    %159 = vmatprep.subr.mxu0 0.0
    %160 = vmatpush1.msra.mxu0 %v19
    %161 = vmatprep.subr.mxu0 0.0
    %162 = vmatpush1.msra.mxu0 %v20
    %163 = vmatprep.subr.mxu0 0.0
    %164 = vmatpush1.msra.mxu0 %v21
    %165 = vmatprep.subr.mxu0 0.0
    %166 = vmatpush1.msra.mxu0 %v22
    %167 = vmatprep.subr.mxu0 0.0
    %168 = vmatpush1.msra.mxu0 0.0
    %169 = vmatprep.subr.mxu0 0.0
    %170 = vmatpush1.msra.mxu0 0.0
    %171 = vmatprep.subr.mxu0 0.0
    %172 = vmatpush1.msra.mxu0 0.0
    %173 = vmatprep.subr.mxu0 0.0
    %174 = vmatpush1.msra.mxu0 0.0
    %175 = vmatprep.subr.mxu0 0.0
    %176 = vmatpush1.msra.mxu0 0.0
    %177 = vmatprep.subr.mxu0 0.0
    %178 = vmatpush1.msra.mxu0 0.0
    %179 = vmatprep.subr.mxu0 0.0
    %180 = vmatpush1.msra.mxu0 0.0
    %181 = vmatprep.subr.mxu0 0.0
    %182 = vmatpush1.msra.mxu0 0.0
    %183 = vmatprep.subr.mxu0 0.0
    %184 = vmatpush1.msra.mxu0 0.0
    %185 = vmatprep.subr.mxu0 0.0
    %186 = vmatpush1.msra.mxu0 0.0
    %187 = vmatprep.subr.mxu0 0.0
    %188 = vmatpush1.msra.mxu0 0.0
    %189 = vmatprep.subr.mxu0 0.0
    %190 = vmatpush1.msra.mxu0 0.0
    %191 = vmatprep.subr.mxu0 0.0
    %192 = vmatpush1.msra.mxu0 0.0
    %193 = vmatprep.subr.mxu0 0.0
    %194 = vmatpush1.msra.mxu0 0.0
    %195 = vmatprep.subr.mxu0 0.0
    %196 = vmatpush1.msra.mxu0 0.0
    %197 = vmatprep.subr.mxu0 0.0
    %198 = vmatpush1.msra.mxu0 0.0
    %199 = vmatprep.subr.mxu0 0.0
    %200 = vmatpush1.msra.mxu0 0.0
    %201 = vmatprep.subr.mxu0 0.0
    %202 = vmatpush1.msra.mxu0 0.0
    %203 = vmatprep.subr.mxu0 0.0
    %204 = vmatpush1.msra.mxu0 0.0
    %205 = vmatprep.subr.mxu0 0.0
    %206 = vmatpush1.msra.mxu0 0.0
    %207 = vmatprep.subr.mxu0 0.0
    %208 = vmatpush1.msra.mxu0 0.0
    %209 = vmatprep.subr.mxu0 0.0
    %210 = vmatpush1.msra.mxu0 0.0
    %211 = vmatprep.subr.mxu0 0.0
    %212 = vmatpush1.msra.mxu0 0.0
    %213 = vmatprep.subr.mxu0 0.0
    %214 = vmatpush1.msra.mxu0 0.0
    %215 = vmatprep.subr.mxu0 0.0
    %216 = vmatpush1.msra.mxu0 0.0
    %217 = vmatprep.subr.mxu0 0.0
    %218 = vmatpush1.msra.mxu0 0.0
    %219 = vmatprep.mubr.f32.mxu0 0.0
    %220 = vmatmul.mubr.f32.gmra.mrb[0].mxu0 %v153
    %v221 = vpop.f32.mrb[0].mxu0
    %v222 = vadd.f32 %v150, %v221
    %v223 = vpop.f32.mrb[0].mxu0
    %224 = vdwg.mxu0
    %v225 = vtanh.pop %v222
    %vm226 = vcmp.lt.s32.totalorder %v69, 32
    %vm227 = vmand %vm145, %vm226
    %v228 = vsel %vm227, %v225, %v148
    %v229 = vrot.slane %v42, 2
    %v232 = vsel %vm70, %v228, 0
    %234 = vmatprep.subr.mxu0 0.0
    %235 = vmatpush1.msra.mxu0 %v17
    %236 = vmatprep.subr.mxu0 0.0
    %237 = vmatpush1.msra.mxu0 %v18
    %238 = vmatprep.subr.mxu0 0.0
    %239 = vmatpush1.msra.mxu0 %v19
    %240 = vmatprep.subr.mxu0 0.0
    %241 = vmatpush1.msra.mxu0 %v20
    %242 = vmatprep.subr.mxu0 0.0
    %243 = vmatpush1.msra.mxu0 %v21
    %244 = vmatprep.subr.mxu0 0.0
    %245 = vmatpush1.msra.mxu0 %v22
    %246 = vmatprep.subr.mxu0 0.0
    %247 = vmatpush1.msra.mxu0 0.0
    %248 = vmatprep.subr.mxu0 0.0
    %249 = vmatpush1.msra.mxu0 0.0
    %250 = vmatprep.subr.mxu0 0.0
    %251 = vmatpush1.msra.mxu0 0.0
    %252 = vmatprep.subr.mxu0 0.0
    %253 = vmatpush1.msra.mxu0 0.0
    %254 = vmatprep.subr.mxu0 0.0
    %255 = vmatpush1.msra.mxu0 0.0
    %256 = vmatprep.subr.mxu0 0.0
    %257 = vmatpush1.msra.mxu0 0.0
    %258 = vmatprep.subr.mxu0 0.0
    %259 = vmatpush1.msra.mxu0 0.0
    %260 = vmatprep.subr.mxu0 0.0
    %261 = vmatpush1.msra.mxu0 0.0
    %262 = vmatprep.subr.mxu0 0.0
    %263 = vmatpush1.msra.mxu0 0.0
    %264 = vmatprep.subr.mxu0 0.0
    %265 = vmatpush1.msra.mxu0 0.0
    %266 = vmatprep.subr.mxu0 0.0
    %267 = vmatpush1.msra.mxu0 0.0
    %268 = vmatprep.subr.mxu0 0.0
    %269 = vmatpush1.msra.mxu0 0.0
    %270 = vmatprep.subr.mxu0 0.0
    %271 = vmatpush1.msra.mxu0 0.0
    %272 = vmatprep.subr.mxu0 0.0
    %273 = vmatpush1.msra.mxu0 0.0
    %274 = vmatprep.subr.mxu0 0.0
    %275 = vmatpush1.msra.mxu0 0.0
    %276 = vmatprep.subr.mxu0 0.0
    %277 = vmatpush1.msra.mxu0 0.0
    %278 = vmatprep.subr.mxu0 0.0
    %279 = vmatpush1.msra.mxu0 0.0
    %280 = vmatprep.subr.mxu0 0.0
    %281 = vmatpush1.msra.mxu0 0.0
    %282 = vmatprep.subr.mxu0 0.0
    %283 = vmatpush1.msra.mxu0 0.0
    %284 = vmatprep.subr.mxu0 0.0
    %285 = vmatpush1.msra.mxu0 0.0
    %286 = vmatprep.subr.mxu0 0.0
    %287 = vmatpush1.msra.mxu0 0.0
    %288 = vmatprep.subr.mxu0 0.0
    %289 = vmatpush1.msra.mxu0 0.0
    %290 = vmatprep.subr.mxu0 0.0
    %291 = vmatpush1.msra.mxu0 0.0
    %292 = vmatprep.subr.mxu0 0.0
    %293 = vmatpush1.msra.mxu0 0.0
    %294 = vmatprep.subr.mxu0 0.0
    %295 = vmatpush1.msra.mxu0 0.0
    %296 = vmatprep.subr.mxu0 0.0
    %297 = vmatpush1.msra.mxu0 0.0
    %298 = vmatprep.mubr.f32.mxu0 0.0
    %299 = vmatmul.mubr.f32.gmra.mrb[0].mxu0 %v232
    %v300 = vpop.f32.mrb[0].mxu0
    %v301 = vadd.f32 %v229, %v300
    %v302 = vpop.f32.mrb[0].mxu0
    %303 = vdwg.mxu0
    %v304 = vtanh.pop %v301
    %v305 = vmul.f32 %v304, %v24
    %vm306 = vcmask 385024
    %v307 = vsel %vm306, %v305, 0.0
    %308 = vadd.xlane.f32.xlu0 %v307
    %v309 = vpop.xlane.xlu0 %308
    %v310 = vrot.slane %v42, 3
    %v313 = vsel %vm70, %v304, 0
    %315 = vmatprep.subr.mxu0 0.0
    %316 = vmatpush1.msra.mxu0 %v17
    %317 = vmatprep.subr.mxu0 0.0
    %318 = vmatpush1.msra.mxu0 %v18
    %319 = vmatprep.subr.mxu0 0.0
    %320 = vmatpush1.msra.mxu0 %v19
    %321 = vmatprep.subr.mxu0 0.0
    %322 = vmatpush1.msra.mxu0 %v20
    %323 = vmatprep.subr.mxu0 0.0
    %324 = vmatpush1.msra.mxu0 %v21
    %325 = vmatprep.subr.mxu0 0.0
    %326 = vmatpush1.msra.mxu0 %v22
    %327 = vmatprep.subr.mxu0 0.0
    %328 = vmatpush1.msra.mxu0 0.0
    %329 = vmatprep.subr.mxu0 0.0
    %330 = vmatpush1.msra.mxu0 0.0
    %331 = vmatprep.subr.mxu0 0.0
    %332 = vmatpush1.msra.mxu0 0.0
    %333 = vmatprep.subr.mxu0 0.0
    %334 = vmatpush1.msra.mxu0 0.0
    %335 = vmatprep.subr.mxu0 0.0
    %336 = vmatpush1.msra.mxu0 0.0
    %337 = vmatprep.subr.mxu0 0.0
    %338 = vmatpush1.msra.mxu0 0.0
    %339 = vmatprep.subr.mxu0 0.0
    %340 = vmatpush1.msra.mxu0 0.0
    %341 = vmatprep.subr.mxu0 0.0
    %342 = vmatpush1.msra.mxu0 0.0
    %343 = vmatprep.subr.mxu0 0.0
    %344 = vmatpush1.msra.mxu0 0.0
    %345 = vmatprep.subr.mxu0 0.0
    %346 = vmatpush1.msra.mxu0 0.0
    %347 = vmatprep.subr.mxu0 0.0
    %348 = vmatpush1.msra.mxu0 0.0
    %349 = vmatprep.subr.mxu0 0.0
    %350 = vmatpush1.msra.mxu0 0.0
    %351 = vmatprep.subr.mxu0 0.0
    %352 = vmatpush1.msra.mxu0 0.0
    %353 = vmatprep.subr.mxu0 0.0
    %354 = vmatpush1.msra.mxu0 0.0
    %355 = vmatprep.subr.mxu0 0.0
    %356 = vmatpush1.msra.mxu0 0.0
    %357 = vmatprep.subr.mxu0 0.0
    %358 = vmatpush1.msra.mxu0 0.0
    %359 = vmatprep.subr.mxu0 0.0
    %360 = vmatpush1.msra.mxu0 0.0
    %361 = vmatprep.subr.mxu0 0.0
    %362 = vmatpush1.msra.mxu0 0.0
    %363 = vmatprep.subr.mxu0 0.0
    %364 = vmatpush1.msra.mxu0 0.0
    %365 = vmatprep.subr.mxu0 0.0
    %366 = vmatpush1.msra.mxu0 0.0
    %367 = vmatprep.subr.mxu0 0.0
    %368 = vmatpush1.msra.mxu0 0.0
    %369 = vmatprep.subr.mxu0 0.0
    %370 = vmatpush1.msra.mxu0 0.0
    %371 = vmatprep.subr.mxu0 0.0
    %372 = vmatpush1.msra.mxu0 0.0
    %373 = vmatprep.subr.mxu0 0.0
    %374 = vmatpush1.msra.mxu0 0.0
    %375 = vmatprep.subr.mxu0 0.0
    %376 = vmatpush1.msra.mxu0 0.0
    %377 = vmatprep.subr.mxu0 0.0
    %378 = vmatpush1.msra.mxu0 0.0
    %379 = vmatprep.mubr.f32.mxu0 0.0
    %380 = vmatmul.mubr.f32.gmra.mrb[0].mxu0 %v313
    %v381 = vpop.f32.mrb[0].mxu0
    %v382 = vadd.f32 %v310, %v381
    %v383 = vpop.f32.mrb[0].mxu0
    %384 = vdwg.mxu0
    %v385 = vtanh.pop %v382
    %v386 = vmul.f32 %v385, %v24
    %v387 = vsel %vm306, %v386, 0.0
    %388 = vadd.xlane.f32.xlu0 %v387
    %v389 = vpop.xlane.xlu0 %388
    %v390 = vrot.slane %v42, 4
    %v393 = vsel %vm70, %v385, 0
    %395 = vmatprep.subr.mxu0 0.0
    %396 = vmatpush1.msra.mxu0 %v17
    %397 = vmatprep.subr.mxu0 0.0
    %398 = vmatpush1.msra.mxu0 %v18
    %399 = vmatprep.subr.mxu0 0.0
    %400 = vmatpush1.msra.mxu0 %v19
    %401 = vmatprep.subr.mxu0 0.0
    %402 = vmatpush1.msra.mxu0 %v20
    %403 = vmatprep.subr.mxu0 0.0
    %404 = vmatpush1.msra.mxu0 %v21
    %405 = vmatprep.subr.mxu0 0.0
    %406 = vmatpush1.msra.mxu0 %v22
    %407 = vmatprep.subr.mxu0 0.0
    %408 = vmatpush1.msra.mxu0 0.0
    %409 = vmatprep.subr.mxu0 0.0
    %410 = vmatpush1.msra.mxu0 0.0
    %411 = vmatprep.subr.mxu0 0.0
    %412 = vmatpush1.msra.mxu0 0.0
    %413 = vmatprep.subr.mxu0 0.0
    %414 = vmatpush1.msra.mxu0 0.0
    %415 = vmatprep.subr.mxu0 0.0
    %416 = vmatpush1.msra.mxu0 0.0
    %417 = vmatprep.subr.mxu0 0.0
    %418 = vmatpush1.msra.mxu0 0.0
    %419 = vmatprep.subr.mxu0 0.0
    %420 = vmatpush1.msra.mxu0 0.0
    %421 = vmatprep.subr.mxu0 0.0
    %422 = vmatpush1.msra.mxu0 0.0
    %423 = vmatprep.subr.mxu0 0.0
    %424 = vmatpush1.msra.mxu0 0.0
    %425 = vmatprep.subr.mxu0 0.0
    %426 = vmatpush1.msra.mxu0 0.0
    %427 = vmatprep.subr.mxu0 0.0
    %428 = vmatpush1.msra.mxu0 0.0
    %429 = vmatprep.subr.mxu0 0.0
    %430 = vmatpush1.msra.mxu0 0.0
    %431 = vmatprep.subr.mxu0 0.0
    %432 = vmatpush1.msra.mxu0 0.0
    %433 = vmatprep.subr.mxu0 0.0
    %434 = vmatpush1.msra.mxu0 0.0
    %435 = vmatprep.subr.mxu0 0.0
    %436 = vmatpush1.msra.mxu0 0.0
    %437 = vmatprep.subr.mxu0 0.0
    %438 = vmatpush1.msra.mxu0 0.0
    %439 = vmatprep.subr.mxu0 0.0
    %440 = vmatpush1.msra.mxu0 0.0
    %441 = vmatprep.subr.mxu0 0.0
    %442 = vmatpush1.msra.mxu0 0.0
    %443 = vmatprep.subr.mxu0 0.0
    %444 = vmatpush1.msra.mxu0 0.0
    %445 = vmatprep.subr.mxu0 0.0
    %446 = vmatpush1.msra.mxu0 0.0
    %447 = vmatprep.subr.mxu0 0.0
    %448 = vmatpush1.msra.mxu0 0.0
    %449 = vmatprep.subr.mxu0 0.0
    %450 = vmatpush1.msra.mxu0 0.0
    %451 = vmatprep.subr.mxu0 0.0
    %452 = vmatpush1.msra.mxu0 0.0
    %453 = vmatprep.subr.mxu0 0.0
    %454 = vmatpush1.msra.mxu0 0.0
    %455 = vmatprep.subr.mxu0 0.0
    %456 = vmatpush1.msra.mxu0 0.0
    %457 = vmatprep.subr.mxu0 0.0
    %458 = vmatpush1.msra.mxu0 0.0
    %459 = vmatprep.mubr.f32.mxu0 0.0
    %460 = vmatmul.mubr.f32.gmra.mrb[0].mxu0 %v393
    %v461 = vpop.f32.mrb[0].mxu0
    %v462 = vadd.f32 %v390, %v461
    %v463 = vpop.f32.mrb[0].mxu0
    %464 = vdwg.mxu0
    %v465 = vtanh.pop %v462
    %v466 = vmul.f32 %v465, %v24
    %v467 = vsel %vm306, %v466, 0.0
    %468 = vadd.xlane.f32.xlu0 %v467
    %v469 = vpop.xlane.xlu0 %468
    %v470 = vrot.slane %v42, 5
    %v473 = vsel %vm70, %v465, 0
    %475 = vmatprep.subr.mxu0 0.0
    %476 = vmatpush1.msra.mxu0 %v17
    %477 = vmatprep.subr.mxu0 0.0
    %478 = vmatpush1.msra.mxu0 %v18
    %479 = vmatprep.subr.mxu0 0.0
    %480 = vmatpush1.msra.mxu0 %v19
    %481 = vmatprep.subr.mxu0 0.0
    %482 = vmatpush1.msra.mxu0 %v20
    %483 = vmatprep.subr.mxu0 0.0
    %484 = vmatpush1.msra.mxu0 %v21
    %485 = vmatprep.subr.mxu0 0.0
    %486 = vmatpush1.msra.mxu0 %v22
    %487 = vmatprep.subr.mxu0 0.0
    %488 = vmatpush1.msra.mxu0 0.0
    %489 = vmatprep.subr.mxu0 0.0
    %490 = vmatpush1.msra.mxu0 0.0
    %491 = vmatprep.subr.mxu0 0.0
    %492 = vmatpush1.msra.mxu0 0.0
    %493 = vmatprep.subr.mxu0 0.0
    %494 = vmatpush1.msra.mxu0 0.0
    %495 = vmatprep.subr.mxu0 0.0
    %496 = vmatpush1.msra.mxu0 0.0
    %497 = vmatprep.subr.mxu0 0.0
    %498 = vmatpush1.msra.mxu0 0.0
    %499 = vmatprep.subr.mxu0 0.0
    %500 = vmatpush1.msra.mxu0 0.0
    %501 = vmatprep.subr.mxu0 0.0
    %502 = vmatpush1.msra.mxu0 0.0
    %503 = vmatprep.subr.mxu0 0.0
    %504 = vmatpush1.msra.mxu0 0.0
    %505 = vmatprep.subr.mxu0 0.0
    %506 = vmatpush1.msra.mxu0 0.0
    %507 = vmatprep.subr.mxu0 0.0
    %508 = vmatpush1.msra.mxu0 0.0
    %509 = vmatprep.subr.mxu0 0.0
    %510 = vmatpush1.msra.mxu0 0.0
    %511 = vmatprep.subr.mxu0 0.0
    %512 = vmatpush1.msra.mxu0 0.0
    %513 = vmatprep.subr.mxu0 0.0
    %514 = vmatpush1.msra.mxu0 0.0
    %515 = vmatprep.subr.mxu0 0.0
    %516 = vmatpush1.msra.mxu0 0.0
    %517 = vmatprep.subr.mxu0 0.0
    %518 = vmatpush1.msra.mxu0 0.0
    %519 = vmatprep.subr.mxu0 0.0
    %520 = vmatpush1.msra.mxu0 0.0
    %521 = vmatprep.subr.mxu0 0.0
    %522 = vmatpush1.msra.mxu0 0.0
    %523 = vmatprep.subr.mxu0 0.0
    %524 = vmatpush1.msra.mxu0 0.0
    %525 = vmatprep.subr.mxu0 0.0
    %526 = vmatpush1.msra.mxu0 0.0
    %527 = vmatprep.subr.mxu0 0.0
    %528 = vmatpush1.msra.mxu0 0.0
    %529 = vmatprep.subr.mxu0 0.0
    %530 = vmatpush1.msra.mxu0 0.0
    %531 = vmatprep.subr.mxu0 0.0
    %532 = vmatpush1.msra.mxu0 0.0
    %533 = vmatprep.subr.mxu0 0.0
    %534 = vmatpush1.msra.mxu0 0.0
    %535 = vmatprep.subr.mxu0 0.0
    %536 = vmatpush1.msra.mxu0 0.0
    %537 = vmatprep.subr.mxu0 0.0
    %538 = vmatpush1.msra.mxu0 0.0
    %539 = vmatprep.mubr.f32.mxu0 0.0
    %540 = vmatmul.mubr.f32.gmra.mrb[0].mxu0 %v473
    %v541 = vpop.f32.mrb[0].mxu0
    %v542 = vadd.f32 %v470, %v541
    %v543 = vpop.f32.mrb[0].mxu0
    %544 = vdwg.mxu0
    %v545 = vtanh.pop %v542
    %v546 = vmul.f32 %v545, %v24
    %v547 = vsel %vm306, %v546, 0.0
    %548 = vadd.xlane.f32.xlu0 %v547
    %v549 = vpop.xlane.xlu0 %548
    %v550 = vrot.slane %v42, 6
    %v553 = vsel %vm70, %v545, 0
    %555 = vmatprep.subr.mxu0 0.0
    %556 = vmatpush1.msra.mxu0 %v17
    %557 = vmatprep.subr.mxu0 0.0
    %558 = vmatpush1.msra.mxu0 %v18
    %559 = vmatprep.subr.mxu0 0.0
    %560 = vmatpush1.msra.mxu0 %v19
    %561 = vmatprep.subr.mxu0 0.0
    %562 = vmatpush1.msra.mxu0 %v20
    %563 = vmatprep.subr.mxu0 0.0
    %564 = vmatpush1.msra.mxu0 %v21
    %565 = vmatprep.subr.mxu0 0.0
    %566 = vmatpush1.msra.mxu0 %v22
    %567 = vmatprep.subr.mxu0 0.0
    %568 = vmatpush1.msra.mxu0 0.0
    %569 = vmatprep.subr.mxu0 0.0
    %570 = vmatpush1.msra.mxu0 0.0
    %571 = vmatprep.subr.mxu0 0.0
    %572 = vmatpush1.msra.mxu0 0.0
    %573 = vmatprep.subr.mxu0 0.0
    %574 = vmatpush1.msra.mxu0 0.0
    %575 = vmatprep.subr.mxu0 0.0
    %576 = vmatpush1.msra.mxu0 0.0
    %577 = vmatprep.subr.mxu0 0.0
    %578 = vmatpush1.msra.mxu0 0.0
    %579 = vmatprep.subr.mxu0 0.0
    %580 = vmatpush1.msra.mxu0 0.0
    %581 = vmatprep.subr.mxu0 0.0
    %582 = vmatpush1.msra.mxu0 0.0
    %583 = vmatprep.subr.mxu0 0.0
    %584 = vmatpush1.msra.mxu0 0.0
    %585 = vmatprep.subr.mxu0 0.0
    %586 = vmatpush1.msra.mxu0 0.0
    %587 = vmatprep.subr.mxu0 0.0
    %588 = vmatpush1.msra.mxu0 0.0
    %589 = vmatprep.subr.mxu0 0.0
    %590 = vmatpush1.msra.mxu0 0.0
    %591 = vmatprep.subr.mxu0 0.0
    %592 = vmatpush1.msra.mxu0 0.0
    %593 = vmatprep.subr.mxu0 0.0
    %594 = vmatpush1.msra.mxu0 0.0
    %595 = vmatprep.subr.mxu0 0.0
    %596 = vmatpush1.msra.mxu0 0.0
    %597 = vmatprep.subr.mxu0 0.0
    %598 = vmatpush1.msra.mxu0 0.0
    %599 = vmatprep.subr.mxu0 0.0
    %600 = vmatpush1.msra.mxu0 0.0
    %601 = vmatprep.subr.mxu0 0.0
    %602 = vmatpush1.msra.mxu0 0.0
    %603 = vmatprep.subr.mxu0 0.0
    %604 = vmatpush1.msra.mxu0 0.0
    %605 = vmatprep.subr.mxu0 0.0
    %606 = vmatpush1.msra.mxu0 0.0
    %607 = vmatprep.subr.mxu0 0.0
    %608 = vmatpush1.msra.mxu0 0.0
    %609 = vmatprep.subr.mxu0 0.0
    %610 = vmatpush1.msra.mxu0 0.0
    %611 = vmatprep.subr.mxu0 0.0
    %612 = vmatpush1.msra.mxu0 0.0
    %613 = vmatprep.subr.mxu0 0.0
    %614 = vmatpush1.msra.mxu0 0.0
    %615 = vmatprep.subr.mxu0 0.0
    %616 = vmatpush1.msra.mxu0 0.0
    %617 = vmatprep.subr.mxu0 0.0
    %618 = vmatpush1.msra.mxu0 0.0
    %619 = vmatprep.mubr.f32.mxu0 0.0
    %620 = vmatmul.mubr.f32.gmra.mrb[0].mxu0 %v553
    %v621 = vpop.f32.mrb[0].mxu0
    %v622 = vadd.f32 %v550, %v621
    %v623 = vpop.f32.mrb[0].mxu0
    %624 = vdwg.mxu0
    %v625 = vtanh.pop %v622
    %v626 = vmul.f32 %v625, %v24
    %v627 = vsel %vm306, %v626, 0.0
    %628 = vadd.xlane.f32.xlu0 %v627
    %v629 = vpop.xlane.xlu0 %628
    %v630 = vrot.slane %v42, 7
    %v633 = vsel %vm70, %v625, 0
    %635 = vmatprep.subr.mxu0 0.0
    %636 = vmatpush1.msra.mxu0 %v17
    %637 = vmatprep.subr.mxu0 0.0
    %638 = vmatpush1.msra.mxu0 %v18
    %639 = vmatprep.subr.mxu0 0.0
    %640 = vmatpush1.msra.mxu0 %v19
    %641 = vmatprep.subr.mxu0 0.0
    %642 = vmatpush1.msra.mxu0 %v20
    %643 = vmatprep.subr.mxu0 0.0
    %644 = vmatpush1.msra.mxu0 %v21
    %645 = vmatprep.subr.mxu0 0.0
    %646 = vmatpush1.msra.mxu0 %v22
    %647 = vmatprep.subr.mxu0 0.0
    %648 = vmatpush1.msra.mxu0 0.0
    %649 = vmatprep.subr.mxu0 0.0
    %650 = vmatpush1.msra.mxu0 0.0
    %651 = vmatprep.subr.mxu0 0.0
    %652 = vmatpush1.msra.mxu0 0.0
    %653 = vmatprep.subr.mxu0 0.0
    %654 = vmatpush1.msra.mxu0 0.0
    %655 = vmatprep.subr.mxu0 0.0
    %656 = vmatpush1.msra.mxu0 0.0
    %657 = vmatprep.subr.mxu0 0.0
    %658 = vmatpush1.msra.mxu0 0.0
    %659 = vmatprep.subr.mxu0 0.0
    %660 = vmatpush1.msra.mxu0 0.0
    %661 = vmatprep.subr.mxu0 0.0
    %662 = vmatpush1.msra.mxu0 0.0
    %663 = vmatprep.subr.mxu0 0.0
    %664 = vmatpush1.msra.mxu0 0.0
    %665 = vmatprep.subr.mxu0 0.0
    %666 = vmatpush1.msra.mxu0 0.0
    %667 = vmatprep.subr.mxu0 0.0
    %668 = vmatpush1.msra.mxu0 0.0
    %669 = vmatprep.subr.mxu0 0.0
    %670 = vmatpush1.msra.mxu0 0.0
    %671 = vmatprep.subr.mxu0 0.0
    %672 = vmatpush1.msra.mxu0 0.0
    %673 = vmatprep.subr.mxu0 0.0
    %674 = vmatpush1.msra.mxu0 0.0
    %675 = vmatprep.subr.mxu0 0.0
    %676 = vmatpush1.msra.mxu0 0.0
    %677 = vmatprep.subr.mxu0 0.0
    %678 = vmatpush1.msra.mxu0 0.0
    %679 = vmatprep.subr.mxu0 0.0
    %680 = vmatpush1.msra.mxu0 0.0
    %681 = vmatprep.subr.mxu0 0.0
    %682 = vmatpush1.msra.mxu0 0.0
    %683 = vmatprep.subr.mxu0 0.0
    %684 = vmatpush1.msra.mxu0 0.0
    %685 = vmatprep.subr.mxu0 0.0
    %686 = vmatpush1.msra.mxu0 0.0
    %687 = vmatprep.subr.mxu0 0.0
    %688 = vmatpush1.msra.mxu0 0.0
    %689 = vmatprep.subr.mxu0 0.0
    %690 = vmatpush1.msra.mxu0 0.0
    %691 = vmatprep.subr.mxu0 0.0
    %692 = vmatpush1.msra.mxu0 0.0
    %693 = vmatprep.subr.mxu0 0.0
    %694 = vmatpush1.msra.mxu0 0.0
    %695 = vmatprep.subr.mxu0 0.0
    %696 = vmatpush1.msra.mxu0 0.0
    %697 = vmatprep.subr.mxu0 0.0
    %698 = vmatpush1.msra.mxu0 0.0
    %699 = vmatprep.mubr.f32.mxu0 0.0
    %700 = vmatmul.mubr.f32.gmra.mrb[0].mxu0 %v633
    %v701 = vpop.f32.mrb[0].mxu0
    %v702 = vadd.f32 %v630, %v701
    %v703 = vpop.f32.mrb[0].mxu0
    %704 = vdwg.mxu0
    %v705 = vtanh.pop %v702
    %v706 = vmul.f32 %v705, %v24
    %v707 = vsel %vm306, %v706, 0.0
    %708 = vadd.xlane.f32.xlu0 %v707
    %v709 = vpop.xlane.xlu0 %708
    %v711 = vsel %vm70, %v705, 0
    %713 = vmatprep.subr.mxu0 0.0
    %714 = vmatpush1.msra.mxu0 %v17
    %715 = vmatprep.subr.mxu0 0.0
    %716 = vmatpush1.msra.mxu0 %v18
    %717 = vmatprep.subr.mxu0 0.0
    %718 = vmatpush1.msra.mxu0 %v19
    %719 = vmatprep.subr.mxu0 0.0
    %720 = vmatpush1.msra.mxu0 %v20
    %721 = vmatprep.subr.mxu0 0.0
    %722 = vmatpush1.msra.mxu0 %v21
    %723 = vmatprep.subr.mxu0 0.0
    %724 = vmatpush1.msra.mxu0 %v22
    %725 = vmatprep.subr.mxu0 0.0
    %726 = vmatpush1.msra.mxu0 0.0
    %727 = vmatprep.subr.mxu0 0.0
    %728 = vmatpush1.msra.mxu0 0.0
    %729 = vmatprep.subr.mxu0 0.0
    %730 = vmatpush1.msra.mxu0 0.0
    %731 = vmatprep.subr.mxu0 0.0
    %732 = vmatpush1.msra.mxu0 0.0
    %733 = vmatprep.subr.mxu0 0.0
    %734 = vmatpush1.msra.mxu0 0.0
    %735 = vmatprep.subr.mxu0 0.0
    %736 = vmatpush1.msra.mxu0 0.0
    %737 = vmatprep.subr.mxu0 0.0
    %738 = vmatpush1.msra.mxu0 0.0
    %739 = vmatprep.subr.mxu0 0.0
    %740 = vmatpush1.msra.mxu0 0.0
    %741 = vmatprep.subr.mxu0 0.0
    %742 = vmatpush1.msra.mxu0 0.0
    %743 = vmatprep.subr.mxu0 0.0
    %744 = vmatpush1.msra.mxu0 0.0
    %745 = vmatprep.subr.mxu0 0.0
    %746 = vmatpush1.msra.mxu0 0.0
    %747 = vmatprep.subr.mxu0 0.0
    %748 = vmatpush1.msra.mxu0 0.0
    %749 = vmatprep.subr.mxu0 0.0
    %750 = vmatpush1.msra.mxu0 0.0
    %751 = vmatprep.subr.mxu0 0.0
    %752 = vmatpush1.msra.mxu0 0.0
    %753 = vmatprep.subr.mxu0 0.0
    %754 = vmatpush1.msra.mxu0 0.0
    %755 = vmatprep.subr.mxu0 0.0
    %756 = vmatpush1.msra.mxu0 0.0
    %757 = vmatprep.subr.mxu0 0.0
    %758 = vmatpush1.msra.mxu0 0.0
    %759 = vmatprep.subr.mxu0 0.0
    %760 = vmatpush1.msra.mxu0 0.0
    %761 = vmatprep.subr.mxu0 0.0
    %762 = vmatpush1.msra.mxu0 0.0
    %763 = vmatprep.subr.mxu0 0.0
    %764 = vmatpush1.msra.mxu0 0.0
    %765 = vmatprep.subr.mxu0 0.0
    %766 = vmatpush1.msra.mxu0 0.0
    %767 = vmatprep.subr.mxu0 0.0
    %768 = vmatpush1.msra.mxu0 0.0
    %769 = vmatprep.subr.mxu0 0.0
    %770 = vmatpush1.msra.mxu0 0.0
    %771 = vmatprep.subr.mxu0 0.0
    %772 = vmatpush1.msra.mxu0 0.0
    %773 = vmatprep.subr.mxu0 0.0
    %774 = vmatpush1.msra.mxu0 0.0
    %775 = vmatprep.subr.mxu0 0.0
    %776 = vmatpush1.msra.mxu0 0.0
    %777 = vmatprep.mubr.f32.mxu0 0.0
    %778 = vmatmul.mubr.f32.gmra.mrb[0].mxu0 %v711
    %v779 = vpop.f32.mrb[0].mxu0
    %v780 = vadd.f32 %v23, %v779
    %v781 = vpop.f32.mrb[0].mxu0
    %782 = vdwg.mxu0
    %v783 = vtanh.pop %v780
    %vm784 = vcmp.ge.s32.totalorder %v69, 16
    %vm785 = vcmp.lt.s32.totalorder %v69, 48
    %vm786 = vmand %vm784, %vm785
    %v787 = vsel %vm786, %v783, %v705
    %v788 = vmul.f32 %v787, %v24
    %v789 = vsel %vm306, %v788, 0.0
    %790 = vadd.xlane.f32.xlu0 %v789
    %v791 = vpop.xlane.xlu0 %790
    %v793 = vsel %vm70, %v787, 0
    %795 = vmatprep.subr.mxu0 0.0
    %796 = vmatpush1.msra.mxu0 %v17
    %797 = vmatprep.subr.mxu0 0.0
    %798 = vmatpush1.msra.mxu0 %v18
    %799 = vmatprep.subr.mxu0 0.0
    %800 = vmatpush1.msra.mxu0 %v19
    %801 = vmatprep.subr.mxu0 0.0
    %802 = vmatpush1.msra.mxu0 %v20
    %803 = vmatprep.subr.mxu0 0.0
    %804 = vmatpush1.msra.mxu0 %v21
    %805 = vmatprep.subr.mxu0 0.0
    %806 = vmatpush1.msra.mxu0 %v22
    %807 = vmatprep.subr.mxu0 0.0
    %808 = vmatpush1.msra.mxu0 0.0
    %809 = vmatprep.subr.mxu0 0.0
    %810 = vmatpush1.msra.mxu0 0.0
    %811 = vmatprep.subr.mxu0 0.0
    %812 = vmatpush1.msra.mxu0 0.0
    %813 = vmatprep.subr.mxu0 0.0
    %814 = vmatpush1.msra.mxu0 0.0
    %815 = vmatprep.subr.mxu0 0.0
    %816 = vmatpush1.msra.mxu0 0.0
    %817 = vmatprep.subr.mxu0 0.0
    %818 = vmatpush1.msra.mxu0 0.0
    %819 = vmatprep.subr.mxu0 0.0
    %820 = vmatpush1.msra.mxu0 0.0
    %821 = vmatprep.subr.mxu0 0.0
    %822 = vmatpush1.msra.mxu0 0.0
    %823 = vmatprep.subr.mxu0 0.0
    %824 = vmatpush1.msra.mxu0 0.0
    %825 = vmatprep.subr.mxu0 0.0
    %826 = vmatpush1.msra.mxu0 0.0
    %827 = vmatprep.subr.mxu0 0.0
    %828 = vmatpush1.msra.mxu0 0.0
    %829 = vmatprep.subr.mxu0 0.0
    %830 = vmatpush1.msra.mxu0 0.0
    %831 = vmatprep.subr.mxu0 0.0
    %832 = vmatpush1.msra.mxu0 0.0
    %833 = vmatprep.subr.mxu0 0.0
    %834 = vmatpush1.msra.mxu0 0.0
    %835 = vmatprep.subr.mxu0 0.0
    %836 = vmatpush1.msra.mxu0 0.0
    %837 = vmatprep.subr.mxu0 0.0
    %838 = vmatpush1.msra.mxu0 0.0
    %839 = vmatprep.subr.mxu0 0.0
    %840 = vmatpush1.msra.mxu0 0.0
    %841 = vmatprep.subr.mxu0 0.0
    %842 = vmatpush1.msra.mxu0 0.0
    %843 = vmatprep.subr.mxu0 0.0
    %844 = vmatpush1.msra.mxu0 0.0
    %845 = vmatprep.subr.mxu0 0.0
    %846 = vmatpush1.msra.mxu0 0.0
    %847 = vmatprep.subr.mxu0 0.0
    %848 = vmatpush1.msra.mxu0 0.0
    %849 = vmatprep.subr.mxu0 0.0
    %850 = vmatpush1.msra.mxu0 0.0
    %851 = vmatprep.subr.mxu0 0.0
    %852 = vmatpush1.msra.mxu0 0.0
    %853 = vmatprep.subr.mxu0 0.0
    %854 = vmatpush1.msra.mxu0 0.0
    %855 = vmatprep.subr.mxu0 0.0
    %856 = vmatpush1.msra.mxu0 0.0
    %857 = vmatprep.subr.mxu0 0.0
    %858 = vmatpush1.msra.mxu0 0.0
    %859 = vmatprep.mubr.f32.mxu0 0.0
    %860 = vmatmul.mubr.f32.gmra.mrb[0].mxu0 %v793
    %v861 = vpop.f32.mrb[0].mxu0
    %v862 = vadd.f32 %v23, %v861
    %v863 = vpop.f32.mrb[0].mxu0
    %864 = vdwg.mxu0
    %v865 = vtanh.pop %v862
    %vm866 = vcmp.ge.s32.totalorder %v69, 32
    %vm867 = vmand %vm866, %vm785
    %v868 = vsel %vm867, %v865, %v787
    %v869 = vmul.f32 %v868, %v24
    %v870 = vsel %vm306, %v869, 0.0
    %871 = vadd.xlane.f32.xlu0 %v870
    %v872 = vpop.xlane.xlu0 %871
    %vm873 = vcmask 7168
    %v874 = vsel %vm873, %v309, %v389
    %vm875 = vcmask 15360
    %v876 = vsel %vm875, %v874, %v469
    %vm877 = vcmask 23552
    %v878 = vsel %vm877, %v876, %v549
    %vm879 = vcmask 31744
    %v880 = vsel %vm879, %v878, %v629
    %vm881 = vcmask 39936
    %v882 = vsel %vm881, %v880, %v709
    %vm883 = vcmask 48128
    %v884 = vsel %vm883, %v882, %v791
    %vm885 = vcmask 56320
    %v886 = vsel %vm885, %v884, %v872
    %888 = vset.pattern.permute.xlu0 0
    %889 = vperm.xlu0 %888, %v26
    %v890 = vpop.permute.xlu0 %889
    %v892 = vadd.f32 %v886, %v890
    %vm893 = vcmask 57344
    %894 = vst.msk [vmem:[#allocation2] sm:$0x1] %vm893, %v892
    %895 = vst.msk [vmem:[%s4] sm:$0x1] %vm306, %v868
    // Predicated region
    $region14: #{net_forward.1} parent=1 // pred_check
      _
    $region15: #{net_forward.1} parent=1 // pred_check_branch
      %897 = sbr.rel (0) target = $region17
    $region16: #{net_forward.1} parent=1 // pred_region
      %s899 = ssub.s32 16, 16
      %900 = vsyncadd [#allocation3], %s899
      %s902 = sshll.u32 [#allocation2], 4
      %s903 = int_to_ptr.vmem [resolvable:$true] %s902
      %905 = dma.vmem_to_hbm [thread:$0]  %s903, 16, %s3, [#allocation3]
    $region17: #{net_forward.1} parent=1 // pred_fallthru
      _
    // Predicated region
    $region18: #{net_forward.1} parent=1 // pred_check
      _
    $region19: #{net_forward.1} parent=1 // pred_check_branch
      %907 = sbr.rel (0) target = $region21
    $region20: #{net_forward.1} parent=1 // pred_region
      _
    $region21: #{net_forward.1} parent=1 // pred_fallthru
      _
    // Predicated region
    $region22: #{net_forward.1} parent=1 // pred_check
      _
    $region23: #{net_forward.1} parent=1 // pred_check_branch
      %909 = sbr.rel (0) target = $region25
    $region24: #{net_forward.1} parent=1 // pred_region
      %910 = dma.done [#allocation3], 16
    $region25: #{net_forward.1} parent=1 // pred_fallthru
      _
    // Predicated region
    $region26: #{net_forward.1} parent=1 // pred_check
      _
    $region27: #{net_forward.1} parent=1 // pred_check_branch
      %912 = sbr.rel (0) target = $region29
    $region28: #{net_forward.1} parent=1 // pred_region
      _
    $region29: #{net_forward.1} parent=1 // pred_fallthru
      _
    %913 = vsyncpa [#allocation3], 1

</llo_original>
